<compile_context>
chip_gen: v6e
topology: v6e:2x2x1
jax: 0.10.0
libtpu: 0.0.40
codegen_flags: <defaults>
</compile_context>

<pallas_src>
import jax
import jax.numpy as jnp
from jax.experimental import pallas as pl
from jax.experimental.pallas import tpu as pltpu

_LANE = 128
_SUBLANE = 8


def _round_up(n, m):
    return -(-n // m) * m


def dendfcnet_kernel(x_ref,
                     w1, b1, w2, b2, w3, b3, w4, b4,
                     out_ref):
    """Four fused (scaled) linear layers; integrator scale pre-folded into W/b."""
    x = x_ref[...]
    h = jax.nn.sigmoid(
        jnp.dot(x, w1[...], preferred_element_type=jnp.float32) + b1[...])
    h = jax.nn.sigmoid(
        jnp.dot(h, w2[...], preferred_element_type=jnp.float32) + b2[...])
    h = jax.nn.sigmoid(
        jnp.dot(h, w3[...], preferred_element_type=jnp.float32) + b3[...])
    out_ref[...] = (
        jnp.dot(h, w4[...], preferred_element_type=jnp.float32) + b4[...]
    ).astype(out_ref.dtype)


def dendfcnet_forward(x, params, *, resolution=50, dt=0.001, tile_b=1024):
    """params: list of 4 tuples (W[in,out], b[out], tau[out])."""
    batch, in_features = x.shape
    num_classes = params[-1][0].shape[1]

    # Closed-form integrator: v_R = drive * (1 - (1 - dt/tau)^R).
    # Fold the per-output scale into W and b so the kernel is pure affine+act.
    folded = []
    for w, b, tau in params:
        scale = 1.0 - (1.0 - dt / tau) ** resolution
        folded.append((w * scale[None, :], (b * scale).reshape(1, -1)))

    # Lane-dense output: zero-pad the last layer's outputs up to 128 lanes.
    out_pad = _round_up(max(num_classes, _LANE), _LANE)
    w4, b4 = folded[-1]
    w4 = jnp.pad(w4, ((0, 0), (0, out_pad - num_classes)))
    b4 = jnp.pad(b4, ((0, 0), (0, out_pad - num_classes)))
    folded[-1] = (w4, b4)

    # Sublane-aligned batch tile; pad batch to a multiple of the tile.
    tb = min(tile_b, _round_up(batch, _SUBLANE))
    padded_batch = _round_up(batch, tb)
    if padded_batch != batch:
        x = jnp.pad(x, ((0, padded_batch - batch), (0, 0)))

    flat_args = []
    weight_specs = []
    for w, b in folded:
        flat_args += [w, b]
        # Full-extent, constant index_map -> weights stay VMEM-resident
        # across all batch-grid steps.
        weight_specs.append(pl.BlockSpec(w.shape, lambda i: (0, 0)))
        weight_specs.append(pl.BlockSpec(b.shape, lambda i: (0, 0)))

    hidden = [p[0].shape[1] for p in folded[:-1]]  # [20, 40, 20]
    flops = 2 * padded_batch * (in_features * hidden[0]
                                + hidden[0] * hidden[1]
                                + hidden[1] * hidden[2]
                                + hidden[2] * out_pad)
    bytes_accessed = 4 * (padded_batch * (in_features + out_pad)
                          + sum(w.size + b.size for w, b in folded))
    cost = pl.CostEstimate(flops=flops,
                           transcendentals=padded_batch * sum(hidden),
                           bytes_accessed=bytes_accessed)

    out = pl.pallas_call(
        dendfcnet_kernel,
        out_shape=jax.ShapeDtypeStruct((padded_batch, out_pad), jnp.float32),
        grid_spec=pltpu.PrefetchScalarGridSpec(
            num_scalar_prefetch=0,
            grid=(padded_batch // tb,),
            in_specs=[pl.BlockSpec((tb, in_features), lambda i: (i, 0))]
            + weight_specs,
            out_specs=pl.BlockSpec((tb, out_pad), lambda i: (i, 0)),
        ),
        compiler_params=pltpu.CompilerParams(
            dimension_semantics=("parallel",)),
        cost_estimate=cost,
    )(x, *flat_args)

    return out[:batch, :num_classes]


def init_params(key, in_features, num_classes):
    """Deterministic PyTorch-Linear-style init; tau initialized to ones."""
    dims = [(in_features, 20), (20, 40), (40, 20), (20, num_classes)]
    params = []
    for d_in, d_out in dims:
        key, kw, kb = jax.random.split(key, 3)
        bound = 1.0 / (d_in ** 0.5)
        w = jax.random.uniform(kw, (d_in, d_out), jnp.float32, -bound, bound)
        b = jax.random.uniform(kb, (d_out,), jnp.float32, -bound, bound)
        tau = jnp.ones((d_out,), jnp.float32)
        params.append((w, b, tau))
    return params


def dendfcnet_reference(x, params, *, resolution=50, dt=0.001):
    """Pure-JAX reference (explicit Euler loop, as in the original module)."""
    def layer(h, p):
        w, b, tau = p
        drive = h @ w + b
        v = jnp.zeros_like(drive)
        for _ in range(resolution):
            v = v + dt * (drive - v) / tau
        return v

    h = jax.nn.sigmoid(layer(x, params[0]))
    h = jax.nn.sigmoid(layer(h, params[1]))
    h = jax.nn.sigmoid(layer(h, params[2]))
    return layer(h, params[3])


if __name__ == "__main__":
    in_features = 16
    num_classes = 10
    batch = 2
    resolution = 50
    dt = 0.001

    key = jax.random.PRNGKey(0)
    key, kx = jax.random.split(key)
    x = jax.random.normal(kx, (batch, in_features), jnp.float32)
    params = init_params(key, in_features, num_classes)

    out = dendfcnet_forward(x, params, resolution=resolution, dt=dt)
    out = jax.block_until_ready(out)

    ref = dendfcnet_reference(x, params, resolution=resolution, dt=dt)
    assert out.shape == (batch, num_classes), out.shape
    assert jnp.allclose(out, ref, atol=1e-5, rtol=1e-5), (out, ref)

    print("KERNEL_OK")
</pallas_src>

<mosaic_0001>
module attributes {stable_mosaic.version = 11 : i64} {
  func.func @dendfcnet_kernel(%arg0: i32, %arg1: memref<8x16xf32, #tpu.memory_space<vmem>>, %arg2: memref<16x20xf32, #tpu.memory_space<vmem>>, %arg3: memref<1x20xf32, #tpu.memory_space<vmem>>, %arg4: memref<20x40xf32, #tpu.memory_space<vmem>>, %arg5: memref<1x40xf32, #tpu.memory_space<vmem>>, %arg6: memref<40x20xf32, #tpu.memory_space<vmem>>, %arg7: memref<1x20xf32, #tpu.memory_space<vmem>>, %arg8: memref<20x128xf32, #tpu.memory_space<vmem>>, %arg9: memref<1x128xf32, #tpu.memory_space<vmem>>, %arg10: memref<8x128xf32, #tpu.memory_space<vmem>>) attributes {dimension_semantics = [#tpu.dimension_semantics<parallel>], iteration_bounds = array<i64: 1>, scalar_prefetch = 0 : i64, scratch_operands = 0 : i64, tpu.core_type = #tpu.core_type<tc>, window_params = [{transform_indices = @transform_0, window_bounds = array<i64: 8, 16>}, {pipeline_mode = #tpu.pipeline_mode<synchronous>, transform_indices = @transform_1, window_bounds = array<i64: 16, 20>}, {pipeline_mode = #tpu.pipeline_mode<synchronous>, transform_indices = @transform_2, window_bounds = array<i64: 1, 20>}, {pipeline_mode = #tpu.pipeline_mode<synchronous>, transform_indices = @transform_3, window_bounds = array<i64: 20, 40>}, {pipeline_mode = #tpu.pipeline_mode<synchronous>, transform_indices = @transform_4, window_bounds = array<i64: 1, 40>}, {pipeline_mode = #tpu.pipeline_mode<synchronous>, transform_indices = @transform_5, window_bounds = array<i64: 40, 20>}, {pipeline_mode = #tpu.pipeline_mode<synchronous>, transform_indices = @transform_6, window_bounds = array<i64: 1, 20>}, {pipeline_mode = #tpu.pipeline_mode<synchronous>, transform_indices = @transform_7, window_bounds = array<i64: 20, 128>}, {pipeline_mode = #tpu.pipeline_mode<synchronous>, transform_indices = @transform_8, window_bounds = array<i64: 1, 128>}, {transform_indices = @transform_9, window_bounds = array<i64: 8, 128>}]} {
    %c0 = arith.constant 0 : index
    %c0_0 = arith.constant 0 : index
    %0 = vector.load %arg1[%c0, %c0_0] : memref<8x16xf32, #tpu.memory_space<vmem>>, vector<8x16xf32>
    %c0_1 = arith.constant 0 : index
    %c0_2 = arith.constant 0 : index
    %1 = vector.load %arg2[%c0_1, %c0_2] : memref<16x20xf32, #tpu.memory_space<vmem>>, vector<16x20xf32>
    %cst = arith.constant dense<0.000000e+00> : vector<8x20xf32>
    %2 = tpu.matmul %0, %1, %cst {dimension_numbers = #tpu.dot_dimension_numbers<[1], [0], [0], [1], [0, 0, 1, 1], [], []>} : vector<8x16xf32>, vector<16x20xf32>, vector<8x20xf32> -> vector<8x20xf32>
    %c0_3 = arith.constant 0 : index
    %c0_4 = arith.constant 0 : index
    %3 = vector.load %arg3[%c0_3, %c0_4] : memref<1x20xf32, #tpu.memory_space<vmem>>, vector<1x20xf32>
    %4 = vector.broadcast %3 : vector<1x20xf32> to vector<8x20xf32>
    %5 = arith.addf %2, %4 : vector<8x20xf32>
    %6 = arith.negf %5 : vector<8x20xf32>
    %7 = math.exp %6 : vector<8x20xf32>
    %cst_5 = arith.constant 1.000000e+00 : f32
    %8 = vector.broadcast %cst_5 : f32 to vector<8x20xf32>
    %9 = arith.addf %8, %7 : vector<8x20xf32>
    %10 = arith.divf %8, %9 : vector<8x20xf32>
    %c0_6 = arith.constant 0 : index
    %c0_7 = arith.constant 0 : index
    %11 = vector.load %arg4[%c0_6, %c0_7] : memref<20x40xf32, #tpu.memory_space<vmem>>, vector<20x40xf32>
    %cst_8 = arith.constant dense<0.000000e+00> : vector<8x40xf32>
    %12 = tpu.matmul %10, %11, %cst_8 {dimension_numbers = #tpu.dot_dimension_numbers<[1], [0], [0], [1], [0, 0, 1, 1], [], []>} : vector<8x20xf32>, vector<20x40xf32>, vector<8x40xf32> -> vector<8x40xf32>
    %c0_9 = arith.constant 0 : index
    %c0_10 = arith.constant 0 : index
    %13 = vector.load %arg5[%c0_9, %c0_10] : memref<1x40xf32, #tpu.memory_space<vmem>>, vector<1x40xf32>
    %14 = vector.broadcast %13 : vector<1x40xf32> to vector<8x40xf32>
    %15 = arith.addf %12, %14 : vector<8x40xf32>
    %16 = arith.negf %15 : vector<8x40xf32>
    %17 = math.exp %16 : vector<8x40xf32>
    %cst_11 = arith.constant 1.000000e+00 : f32
    %18 = vector.broadcast %cst_11 : f32 to vector<8x40xf32>
    %19 = arith.addf %18, %17 : vector<8x40xf32>
    %20 = arith.divf %18, %19 : vector<8x40xf32>
    %c0_12 = arith.constant 0 : index
    %c0_13 = arith.constant 0 : index
    %21 = vector.load %arg6[%c0_12, %c0_13] : memref<40x20xf32, #tpu.memory_space<vmem>>, vector<40x20xf32>
    %cst_14 = arith.constant dense<0.000000e+00> : vector<8x20xf32>
    %22 = tpu.matmul %20, %21, %cst_14 {dimension_numbers = #tpu.dot_dimension_numbers<[1], [0], [0], [1], [0, 0, 1, 1], [], []>} : vector<8x40xf32>, vector<40x20xf32>, vector<8x20xf32> -> vector<8x20xf32>
    %c0_15 = arith.constant 0 : index
    %c0_16 = arith.constant 0 : index
    %23 = vector.load %arg7[%c0_15, %c0_16] : memref<1x20xf32, #tpu.memory_space<vmem>>, vector<1x20xf32>
    %24 = vector.broadcast %23 : vector<1x20xf32> to vector<8x20xf32>
    %25 = arith.addf %22, %24 : vector<8x20xf32>
    %26 = arith.negf %25 : vector<8x20xf32>
    %27 = math.exp %26 : vector<8x20xf32>
    %cst_17 = arith.constant 1.000000e+00 : f32
    %28 = vector.broadcast %cst_17 : f32 to vector<8x20xf32>
    %29 = arith.addf %28, %27 : vector<8x20xf32>
    %30 = arith.divf %28, %29 : vector<8x20xf32>
    %c0_18 = arith.constant 0 : index
    %c0_19 = arith.constant 0 : index
    %31 = vector.load %arg8[%c0_18, %c0_19] : memref<20x128xf32, #tpu.memory_space<vmem>>, vector<20x128xf32>
    %cst_20 = arith.constant dense<0.000000e+00> : vector<8x128xf32>
    %32 = tpu.matmul %30, %31, %cst_20 {dimension_numbers = #tpu.dot_dimension_numbers<[1], [0], [0], [1], [0, 0, 1, 1], [], []>} : vector<8x20xf32>, vector<20x128xf32>, vector<8x128xf32> -> vector<8x128xf32>
    %c0_21 = arith.constant 0 : index
    %c0_22 = arith.constant 0 : index
    %33 = vector.load %arg9[%c0_21, %c0_22] : memref<1x128xf32, #tpu.memory_space<vmem>>, vector<1x128xf32>
    %34 = vector.broadcast %33 : vector<1x128xf32> to vector<8x128xf32>
    %35 = arith.addf %32, %34 : vector<8x128xf32>
    %c0_23 = arith.constant 0 : index
    %c0_24 = arith.constant 0 : index
    %36 = vector.load %arg10[%c0_23, %c0_24] : memref<8x128xf32, #tpu.memory_space<vmem>>, vector<8x128xf32>
    tpu.vector_store %arg10[%c0_23, %c0_24], %35 {strides = array<i32>} : memref<8x128xf32, #tpu.memory_space<vmem>>, vector<8x128xf32>,
    return
  }
  func.func @transform_0(%arg0: i32) -> (i32, i32) {
    %c0_i32 = arith.constant 0 : i32
    %c0_i32_0 = arith.constant 0 : i32
    return %arg0, %c0_i32 : i32, i32
  }
  func.func @transform_1(%arg0: i32) -> (i32, i32) {
    %c0_i32 = arith.constant 0 : i32
    %c0_i32_0 = arith.constant 0 : i32
    %c0_i32_1 = arith.constant 0 : i32
    return %c0_i32, %c0_i32_0 : i32, i32
  }
  func.func @transform_2(%arg0: i32) -> (i32, i32) {
    %c0_i32 = arith.constant 0 : i32
    %c0_i32_0 = arith.constant 0 : i32
    %c0_i32_1 = arith.constant 0 : i32
    return %c0_i32, %c0_i32_0 : i32, i32
  }
  func.func @transform_3(%arg0: i32) -> (i32, i32) {
    %c0_i32 = arith.constant 0 : i32
    %c0_i32_0 = arith.constant 0 : i32
    %c0_i32_1 = arith.constant 0 : i32
    return %c0_i32, %c0_i32_0 : i32, i32
  }
  func.func @transform_4(%arg0: i32) -> (i32, i32) {
    %c0_i32 = arith.constant 0 : i32
    %c0_i32_0 = arith.constant 0 : i32
    %c0_i32_1 = arith.constant 0 : i32
    return %c0_i32, %c0_i32_0 : i32, i32
  }
  func.func @transform_5(%arg0: i32) -> (i32, i32) {
    %c0_i32 = arith.constant 0 : i32
    %c0_i32_0 = arith.constant 0 : i32
    %c0_i32_1 = arith.constant 0 : i32
    return %c0_i32, %c0_i32_0 : i32, i32
  }
  func.func @transform_6(%arg0: i32) -> (i32, i32) {
    %c0_i32 = arith.constant 0 : i32
    %c0_i32_0 = arith.constant 0 : i32
    %c0_i32_1 = arith.constant 0 : i32
    return %c0_i32, %c0_i32_0 : i32, i32
  }
  func.func @transform_7(%arg0: i32) -> (i32, i32) {
    %c0_i32 = arith.constant 0 : i32
    %c0_i32_0 = arith.constant 0 : i32
    %c0_i32_1 = arith.constant 0 : i32
    return %c0_i32, %c0_i32_0 : i32, i32
  }
  func.func @transform_8(%arg0: i32) -> (i32, i32) {
    %c0_i32 = arith.constant 0 : i32
    %c0_i32_0 = arith.constant 0 : i32
    %c0_i32_1 = arith.constant 0 : i32
    return %c0_i32, %c0_i32_0 : i32, i32
  }
  func.func @transform_9(%arg0: i32) -> (i32, i32) {
    %c0_i32 = arith.constant 0 : i32
    %c0_i32_0 = arith.constant 0 : i32
    return %arg0, %c0_i32 : i32, i32
  }
}

</mosaic_0001>

<llo_original>
// kernel: tpu_custom_call.1
$region0: #{tpu_custom_call.1}
  #allocation0 [shape = 'u32[]', space=smem, size = 0x4, offset = 0x4, fixed_abs, tag = 'smem constant byte address 0x4 - core index']
  #allocation1 [shape = 'u32[144,128]{1,0:T(1,128)}', space=vmem, size = 0x12000, scoped, tag = 'internal scratch']
  %s0 = inlined_call_operand.hbm [shape: f32[8,16], index: 0, kind: input, shape index: {}]
  %s1 = inlined_call_operand.vmem [shape: f32[16,20], index: 1, kind: input, shape index: {}]
  %s2 = inlined_call_operand.vmem [shape: f32[1,20], index: 2, kind: input, shape index: {}]
  %s3 = inlined_call_operand.vmem [shape: f32[20,40], index: 3, kind: input, shape index: {}]
  %s4 = inlined_call_operand.vmem [shape: f32[1,40], index: 4, kind: input, shape index: {}]
  %s5 = inlined_call_operand.vmem [shape: f32[40,20], index: 5, kind: input, shape index: {}]
  %s6 = inlined_call_operand.vmem [shape: f32[1,20], index: 6, kind: input, shape index: {}]
  %s7 = inlined_call_operand.vmem [shape: f32[20,128], index: 7, kind: input, shape index: {}]
  %s8 = inlined_call_operand.vmem [shape: f32[1,128], index: 8, kind: input, shape index: {}]
  %s9 = inlined_call_operand.hbm [shape: f32[8,128], index: 9, kind: output, shape index: {}]
  %s10 = sld [smem:[#allocation0]]
  $region50: #{tpu_custom_call.1} parent=0
    _
  %s12 = ssub.s32 1, %s10
  %s13 = scalar_select 0, %s12, %s10
  $region1: #{tpu_custom_call.1} parent=0
    #allocation2 [shape = 'u8[4096]{0}', space=vmem, size = 0x1000, scoped, tag = 'input window, operand 0, single buffered']
    #allocation3 [shape = 's32[1]{0}', space=sflag, size = 0x4, scoped, tag = 'scoped memory for tpu_custom_call.1']
    #allocation4 [shape = 's32[1]{0}', space=sflag, size = 0x4, scoped, tag = 'scoped memory for tpu_custom_call.1']
    #allocation5 [shape = 'u8[4096]{0}', space=vmem, size = 0x1000, scoped, tag = 'output window, operand 0, single buffered']
    %14 = vsyncpa [#allocation3], 0
    %15 = vsyncpa [#allocation4], 0
    // Predicated region
    $region2: #{tpu_custom_call.1} parent=1 // pred_check
      _
    $region3: #{tpu_custom_call.1} parent=1 // pred_check_branch
      %17 = sbr.rel (0) target = $region5
    $region4: #{tpu_custom_call.1} parent=1 // pred_region
      %s19 = ssub.s32 128, 128
      %20 = vsyncadd [#allocation3], %s19
      %s22 = sshll.u32 [#allocation2], 4
      %s23 = int_to_ptr.vmem [resolvable:$true] %s22
      %25 = dma.hbm_to_vmem [thread:$0]  %s0, 128, %s23, [#allocation3]
    $region5: #{tpu_custom_call.1} parent=1 // pred_fallthru
      _
    // Predicated region
    $region6: #{tpu_custom_call.1} parent=1 // pred_check
      _
    $region7: #{tpu_custom_call.1} parent=1 // pred_check_branch
      %27 = sbr.rel (0) target = $region9
    $region8: #{tpu_custom_call.1} parent=1 // pred_region
      _
    $region9: #{tpu_custom_call.1} parent=1 // pred_fallthru
      _
    // Predicated region
    $region10: #{tpu_custom_call.1} parent=1 // pred_check
      _
    $region11: #{tpu_custom_call.1} parent=1 // pred_check_branch
      %29 = sbr.rel (0) target = $region13
    $region12: #{tpu_custom_call.1} parent=1 // pred_region
      _
    $region13: #{tpu_custom_call.1} parent=1 // pred_fallthru
      _
    // Predicated region
    $region14: #{tpu_custom_call.1} parent=1 // pred_check
      _
    $region15: #{tpu_custom_call.1} parent=1 // pred_check_branch
      %31 = sbr.rel (0) target = $region17
    $region16: #{tpu_custom_call.1} parent=1 // pred_region
      _
    $region17: #{tpu_custom_call.1} parent=1 // pred_fallthru
      _
    // Predicated region
    $region18: #{tpu_custom_call.1} parent=1 // pred_check
      _
    $region19: #{tpu_custom_call.1} parent=1 // pred_check_branch
      %33 = sbr.rel (0) target = $region21
    $region20: #{tpu_custom_call.1} parent=1 // pred_region
      _
    $region21: #{tpu_custom_call.1} parent=1 // pred_fallthru
      _
    // Predicated region
    $region22: #{tpu_custom_call.1} parent=1 // pred_check
      _
    $region23: #{tpu_custom_call.1} parent=1 // pred_check_branch
      %35 = sbr.rel (0) target = $region25
    $region24: #{tpu_custom_call.1} parent=1 // pred_region
      _
    $region25: #{tpu_custom_call.1} parent=1 // pred_fallthru
      _
    // Predicated region
    $region26: #{tpu_custom_call.1} parent=1 // pred_check
      _
    $region27: #{tpu_custom_call.1} parent=1 // pred_check_branch
      %37 = sbr.rel (0) target = $region29
    $region28: #{tpu_custom_call.1} parent=1 // pred_region
      _
    $region29: #{tpu_custom_call.1} parent=1 // pred_fallthru
      _
    // Predicated region
    $region30: #{tpu_custom_call.1} parent=1 // pred_check
      _
    $region31: #{tpu_custom_call.1} parent=1 // pred_check_branch
      %39 = sbr.rel (0) target = $region33
    $region32: #{tpu_custom_call.1} parent=1 // pred_region
      _
    $region33: #{tpu_custom_call.1} parent=1 // pred_fallthru
      _
    // Predicated region
    $region34: #{tpu_custom_call.1} parent=1 // pred_check
      _
    $region35: #{tpu_custom_call.1} parent=1 // pred_check_branch
      %41 = sbr.rel (0) target = $region37
    $region36: #{tpu_custom_call.1} parent=1 // pred_region
      _
    $region37: #{tpu_custom_call.1} parent=1 // pred_fallthru
      _
    // Predicated region
    $region38: #{tpu_custom_call.1} parent=1 // pred_check
      _
    $region39: #{tpu_custom_call.1} parent=1 // pred_check_branch
      %43 = sbr.rel (0) target = $region41
    $region40: #{tpu_custom_call.1} parent=1 // pred_region
      %44 = dma.done [#allocation3], 128
    $region41: #{tpu_custom_call.1} parent=1 // pred_fallthru
      _
    %v45 = vld [vmem:[#allocation2] sm:$0xff]
    %v46 = vld [vmem:[%s1] sm:$0xff]
    %v47 = vld [vmem:[%s1 + $0x8] sm:$0xff]
    %v48 = vld [vmem:[%s2] sm:$0x1]
    %v50 = vlaneseq
    %v51 = vshrl.u32 %v50, 7
    %v52 = vsub.s32 0, %v51
    %v53 = vrot.slane %v48, %v52
    %vm55 = vcmask 130048
    %v57 = vsel %vm55, %v45, 0
    %59 = vmatprep.subr.mxu0 0.0
    %60 = vmatpush1.msra.mxu0 0.0
    %61 = vmatprep.subr.mxu0 0.0
    %62 = vmatpush1.msra.mxu0 0.0
    %63 = vmatprep.subr.mxu0 0.0
    %64 = vmatpush1.msra.mxu0 0.0
    %65 = vmatprep.subr.mxu0 0.0
    %66 = vmatpush1.msra.mxu0 0.0
    %67 = vmatprep.subr.mxu0 0.0
    %68 = vmatpush1.msra.mxu0 0.0
    %69 = vmatprep.subr.mxu0 0.0
    %70 = vmatpush1.msra.mxu0 0.0
    %71 = vmatprep.subr.mxu0 0.0
    %72 = vmatpush1.msra.mxu0 0.0
    %73 = vmatprep.subr.mxu0 0.0
    %74 = vmatpush1.msra.mxu0 0.0
    %75 = vmatprep.subr.mxu0 0.0
    %76 = vmatpush1.msra.mxu0 0.0
    %77 = vmatprep.subr.mxu0 0.0
    %78 = vmatpush1.msra.mxu0 0.0
    %79 = vmatprep.subr.mxu0 0.0
    %80 = vmatpush1.msra.mxu0 0.0
    %81 = vmatprep.subr.mxu0 0.0
    %82 = vmatpush1.msra.mxu0 0.0
    %83 = vmatprep.subr.mxu0 0.0
    %84 = vmatpush1.msra.mxu0 0.0
    %85 = vmatprep.subr.mxu0 0.0
    %86 = vmatpush1.msra.mxu0 0.0
    %87 = vmatprep.subr.mxu0 0.0
    %88 = vmatpush1.msra.mxu0 %v47
    %89 = vmatprep.subr.mxu0 0.0
    %90 = vmatpush1.msra.mxu0 %v46
    %91 = vmatprep.subr.mxu0 0.0
    %92 = vmatpush2.msra.mxu0 0.0
    %93 = vmatprep.subr.mxu0 0.0
    %94 = vmatpush2.msra.mxu0 0.0
    %95 = vmatprep.subr.mxu0 0.0
    %96 = vmatpush2.msra.mxu0 0.0
    %97 = vmatprep.subr.mxu0 0.0
    %98 = vmatpush2.msra.mxu0 0.0
    %99 = vmatprep.subr.mxu0 0.0
    %100 = vmatpush2.msra.mxu0 0.0
    %101 = vmatprep.subr.mxu0 0.0
    %102 = vmatpush2.msra.mxu0 0.0
    %103 = vmatprep.subr.mxu0 0.0
    %104 = vmatpush2.msra.mxu0 0.0
    %105 = vmatprep.subr.mxu0 0.0
    %106 = vmatpush2.msra.mxu0 0.0
    %107 = vmatprep.subr.mxu0 0.0
    %108 = vmatpush2.msra.mxu0 0.0
    %109 = vmatprep.subr.mxu0 0.0
    %110 = vmatpush2.msra.mxu0 0.0
    %111 = vmatprep.subr.mxu0 0.0
    %112 = vmatpush2.msra.mxu0 0.0
    %113 = vmatprep.subr.mxu0 0.0
    %114 = vmatpush2.msra.mxu0 0.0
    %115 = vmatprep.subr.mxu0 0.0
    %116 = vmatpush2.msra.mxu0 0.0
    %117 = vmatprep.subr.mxu0 0.0
    %118 = vmatpush2.msra.mxu0 0.0
    %119 = vmatprep.subr.mxu0 0.0
    %120 = vmatpush2.msra.mxu0 0.0
    %121 = vmatprep.subr.mxu0 0.0
    %122 = vmatpush2.msra.mxu0 0.0
    %123 = vmatprep.mubr.f32.mxu0 0.0
    %124 = vmatmul.mubr.f32.gmra.mxu0 %v57
    %v125 = vpop.f32.mrf.mxu0
    %v126 = vadd.f32 %v53, %v125
    %v127 = vpop.f32.mrf.mxu0
    %128 = vdwg.mxu0
    %v129 = vxor.u32 %v126, 2147483648
    %v130 = vmul.f32 %v129, 1.442695
    %v131 = vpow.pop %v130
    %v132 = vadd.f32 %v131, 1.0
    %v133 = vrcp.pop %v132
    %v134 = vmul.f32 1.0, %v133
    %v135 = vld [vmem:[%s3] sm:$0xff]
    %v136 = vld [vmem:[%s3 + $0x8] sm:$0xff]
    %v137 = vld [vmem:[%s3 + $0x10] sm:$0xf]
    %v138 = vld [vmem:[%s4] sm:$0x1]
    %v140 = vlaneseq
    %v141 = vshrl.u32 %v140, 7
    %v142 = vsub.s32 0, %v141
    %v143 = vrot.slane %v138, %v142
    %vm145 = vcmask 162816
    %v147 = vsel %vm145, %v134, 0
    %vm149 = vcmask 1043456
    %v151 = vsel %vm149, %v137, 0
    %153 = vmatprep.subr.mxu0 0.0
    %154 = vmatpush1.msra.mxu0 0.0
    %155 = vmatprep.subr.mxu0 0.0
    %156 = vmatpush1.msra.mxu0 0.0
    %157 = vmatprep.subr.mxu0 0.0
    %158 = vmatpush1.msra.mxu0 0.0
    %159 = vmatprep.subr.mxu0 0.0
    %160 = vmatpush1.msra.mxu0 0.0
    %161 = vmatprep.subr.mxu0 0.0
    %162 = vmatpush1.msra.mxu0 0.0
    %163 = vmatprep.subr.mxu0 0.0
    %164 = vmatpush1.msra.mxu0 0.0
    %165 = vmatprep.subr.mxu0 0.0
    %166 = vmatpush1.msra.mxu0 0.0
    %167 = vmatprep.subr.mxu0 0.0
    %168 = vmatpush1.msra.mxu0 0.0
    %169 = vmatprep.subr.mxu0 0.0
    %170 = vmatpush1.msra.mxu0 0.0
    %171 = vmatprep.subr.mxu0 0.0
    %172 = vmatpush1.msra.mxu0 0.0
    %173 = vmatprep.subr.mxu0 0.0
    %174 = vmatpush1.msra.mxu0 0.0
    %175 = vmatprep.subr.mxu0 0.0
    %176 = vmatpush1.msra.mxu0 0.0
    %177 = vmatprep.subr.mxu0 0.0
    %178 = vmatpush1.msra.mxu0 0.0
    %179 = vmatprep.subr.mxu0 0.0
    %180 = vmatpush1.msra.mxu0 %v151
    %181 = vmatprep.subr.mxu0 0.0
    %182 = vmatpush1.msra.mxu0 %v136
    %183 = vmatprep.subr.mxu0 0.0
    %184 = vmatpush1.msra.mxu0 %v135
    %185 = vmatprep.subr.mxu0 0.0
    %186 = vmatpush2.msra.mxu0 0.0
    %187 = vmatprep.subr.mxu0 0.0
    %188 = vmatpush2.msra.mxu0 0.0
    %189 = vmatprep.subr.mxu0 0.0
    %190 = vmatpush2.msra.mxu0 0.0
    %191 = vmatprep.subr.mxu0 0.0
    %192 = vmatpush2.msra.mxu0 0.0
    %193 = vmatprep.subr.mxu0 0.0
    %194 = vmatpush2.msra.mxu0 0.0
    %195 = vmatprep.subr.mxu0 0.0
    %196 = vmatpush2.msra.mxu0 0.0
    %197 = vmatprep.subr.mxu0 0.0
    %198 = vmatpush2.msra.mxu0 0.0
    %199 = vmatprep.subr.mxu0 0.0
    %200 = vmatpush2.msra.mxu0 0.0
    %201 = vmatprep.subr.mxu0 0.0
    %202 = vmatpush2.msra.mxu0 0.0
    %203 = vmatprep.subr.mxu0 0.0
    %204 = vmatpush2.msra.mxu0 0.0
    %205 = vmatprep.subr.mxu0 0.0
    %206 = vmatpush2.msra.mxu0 0.0
    %207 = vmatprep.subr.mxu0 0.0
    %208 = vmatpush2.msra.mxu0 0.0
    %209 = vmatprep.subr.mxu0 0.0
    %210 = vmatpush2.msra.mxu0 0.0
    %211 = vmatprep.subr.mxu0 0.0
    %212 = vmatpush2.msra.mxu0 0.0
    %213 = vmatprep.subr.mxu0 0.0
    %214 = vmatpush2.msra.mxu0 0.0
    %215 = vmatprep.subr.mxu0 0.0
    %216 = vmatpush2.msra.mxu0 0.0
    %217 = vmatprep.mubr.f32.mxu0 0.0
    %218 = vmatmul.mubr.f32.gmra.mxu0 %v147
    %v219 = vpop.f32.mrf.mxu0
    %v220 = vadd.f32 %v143, %v219
    %v221 = vpop.f32.mrf.mxu0
    %222 = vdwg.mxu0
    %v223 = vxor.u32 %v220, 2147483648
    %v224 = vmul.f32 %v223, 1.442695
    %v225 = vpow.pop %v224
    %v226 = vadd.f32 %v225, 1.0
    %v227 = vrcp.pop %v226
    %v228 = vmul.f32 1.0, %v227
    %v229 = vld [vmem:[%s5] sm:$0xff]
    %v230 = vld [vmem:[%s5 + $0x8] sm:$0xff]
    %v231 = vld [vmem:[%s5 + $0x10] sm:$0xff]
    %v232 = vld [vmem:[%s5 + $0x18] sm:$0xff]
    %v233 = vld [vmem:[%s5 + $0x20] sm:$0xff]
    %v234 = vld [vmem:[%s6] sm:$0x1]
    %v236 = vlaneseq
    %v237 = vshrl.u32 %v236, 7
    %v238 = vsub.s32 0, %v237
    %v239 = vrot.slane %v234, %v238
    %vm241 = vcmask 326656
    %v243 = vsel %vm241, %v228, 0
    %245 = vmatprep.subr.mxu0 0.0
    %246 = vmatpush1.msra.mxu0 0.0
    %247 = vmatprep.subr.mxu0 0.0
    %248 = vmatpush1.msra.mxu0 0.0
    %249 = vmatprep.subr.mxu0 0.0
    %250 = vmatpush1.msra.mxu0 0.0
    %251 = vmatprep.subr.mxu0 0.0
    %252 = vmatpush1.msra.mxu0 0.0
    %253 = vmatprep.subr.mxu0 0.0
    %254 = vmatpush1.msra.mxu0 0.0
    %255 = vmatprep.subr.mxu0 0.0
    %256 = vmatpush1.msra.mxu0 0.0
    %257 = vmatprep.subr.mxu0 0.0
    %258 = vmatpush1.msra.mxu0 0.0
    %259 = vmatprep.subr.mxu0 0.0
    %260 = vmatpush1.msra.mxu0 0.0
    %261 = vmatprep.subr.mxu0 0.0
    %262 = vmatpush1.msra.mxu0 0.0
    %263 = vmatprep.subr.mxu0 0.0
    %264 = vmatpush1.msra.mxu0 0.0
    %265 = vmatprep.subr.mxu0 0.0
    %266 = vmatpush1.msra.mxu0 0.0
    %267 = vmatprep.subr.mxu0 0.0
    %268 = vmatpush1.msra.mxu0 %v233
    %269 = vmatprep.subr.mxu0 0.0
    %270 = vmatpush1.msra.mxu0 %v232
    %271 = vmatprep.subr.mxu0 0.0
    %272 = vmatpush1.msra.mxu0 %v231
    %273 = vmatprep.subr.mxu0 0.0
    %274 = vmatpush1.msra.mxu0 %v230
    %275 = vmatprep.subr.mxu0 0.0
    %276 = vmatpush1.msra.mxu0 %v229
    %277 = vmatprep.subr.mxu0 0.0
    %278 = vmatpush2.msra.mxu0 0.0
    %279 = vmatprep.subr.mxu0 0.0
    %280 = vmatpush2.msra.mxu0 0.0
    %281 = vmatprep.subr.mxu0 0.0
    %282 = vmatpush2.msra.mxu0 0.0
    %283 = vmatprep.subr.mxu0 0.0
    %284 = vmatpush2.msra.mxu0 0.0
    %285 = vmatprep.subr.mxu0 0.0
    %286 = vmatpush2.msra.mxu0 0.0
    %287 = vmatprep.subr.mxu0 0.0
    %288 = vmatpush2.msra.mxu0 0.0
    %289 = vmatprep.subr.mxu0 0.0
    %290 = vmatpush2.msra.mxu0 0.0
    %291 = vmatprep.subr.mxu0 0.0
    %292 = vmatpush2.msra.mxu0 0.0
    %293 = vmatprep.subr.mxu0 0.0
    %294 = vmatpush2.msra.mxu0 0.0
    %295 = vmatprep.subr.mxu0 0.0
    %296 = vmatpush2.msra.mxu0 0.0
    %297 = vmatprep.subr.mxu0 0.0
    %298 = vmatpush2.msra.mxu0 0.0
    %299 = vmatprep.subr.mxu0 0.0
    %300 = vmatpush2.msra.mxu0 0.0
    %301 = vmatprep.subr.mxu0 0.0
    %302 = vmatpush2.msra.mxu0 0.0
    %303 = vmatprep.subr.mxu0 0.0
    %304 = vmatpush2.msra.mxu0 0.0
    %305 = vmatprep.subr.mxu0 0.0
    %306 = vmatpush2.msra.mxu0 0.0
    %307 = vmatprep.subr.mxu0 0.0
    %308 = vmatpush2.msra.mxu0 0.0
    %309 = vmatprep.mubr.f32.mxu0 0.0
    %310 = vmatmul.mubr.f32.gmra.mxu0 %v243
    %v311 = vpop.f32.mrf.mxu0
    %v312 = vadd.f32 %v239, %v311
    %v313 = vpop.f32.mrf.mxu0
    %314 = vdwg.mxu0
    %v315 = vxor.u32 %v312, 2147483648
    %v316 = vmul.f32 %v315, 1.442695
    %v317 = vpow.pop %v316
    %v318 = vadd.f32 %v317, 1.0
    %v319 = vrcp.pop %v318
    %v320 = vmul.f32 1.0, %v319
    %v321 = vld [vmem:[%s7] sm:$0xff]
    %v322 = vld [vmem:[%s7 + $0x8] sm:$0xff]
    %v323 = vld [vmem:[%s7 + $0x10] sm:$0xf]
    %v324 = vld [vmem:[%s8] sm:$0x1]
    %v326 = vlaneseq
    %v327 = vshrl.u32 %v326, 7
    %v328 = vsub.s32 0, %v327
    %v329 = vrot.slane %v324, %v328
    %v332 = vsel %vm145, %v320, 0
    %v335 = vsel %vm149, %v323, 0
    %337 = vmatprep.subr.mxu0 0.0
    %338 = vmatpush1.msra.mxu0 0.0
    %339 = vmatprep.subr.mxu0 0.0
    %340 = vmatpush1.msra.mxu0 0.0
    %341 = vmatprep.subr.mxu0 0.0
    %342 = vmatpush1.msra.mxu0 0.0
    %343 = vmatprep.subr.mxu0 0.0
    %344 = vmatpush1.msra.mxu0 0.0
    %345 = vmatprep.subr.mxu0 0.0
    %346 = vmatpush1.msra.mxu0 0.0
    %347 = vmatprep.subr.mxu0 0.0
    %348 = vmatpush1.msra.mxu0 0.0
    %349 = vmatprep.subr.mxu0 0.0
    %350 = vmatpush1.msra.mxu0 0.0
    %351 = vmatprep.subr.mxu0 0.0
    %352 = vmatpush1.msra.mxu0 0.0
    %353 = vmatprep.subr.mxu0 0.0
    %354 = vmatpush1.msra.mxu0 0.0
    %355 = vmatprep.subr.mxu0 0.0
    %356 = vmatpush1.msra.mxu0 0.0
    %357 = vmatprep.subr.mxu0 0.0
    %358 = vmatpush1.msra.mxu0 0.0
    %359 = vmatprep.subr.mxu0 0.0
    %360 = vmatpush1.msra.mxu0 0.0
    %361 = vmatprep.subr.mxu0 0.0
    %362 = vmatpush1.msra.mxu0 0.0
    %363 = vmatprep.subr.mxu0 0.0
    %364 = vmatpush1.msra.mxu0 %v335
    %365 = vmatprep.subr.mxu0 0.0
    %366 = vmatpush1.msra.mxu0 %v322
    %367 = vmatprep.subr.mxu0 0.0
    %368 = vmatpush1.msra.mxu0 %v321
    %369 = vmatprep.subr.mxu0 0.0
    %370 = vmatpush2.msra.mxu0 0.0
    %371 = vmatprep.subr.mxu0 0.0
    %372 = vmatpush2.msra.mxu0 0.0
    %373 = vmatprep.subr.mxu0 0.0
    %374 = vmatpush2.msra.mxu0 0.0
    %375 = vmatprep.subr.mxu0 0.0
    %376 = vmatpush2.msra.mxu0 0.0
    %377 = vmatprep.subr.mxu0 0.0
    %378 = vmatpush2.msra.mxu0 0.0
    %379 = vmatprep.subr.mxu0 0.0
    %380 = vmatpush2.msra.mxu0 0.0
    %381 = vmatprep.subr.mxu0 0.0
    %382 = vmatpush2.msra.mxu0 0.0
    %383 = vmatprep.subr.mxu0 0.0
    %384 = vmatpush2.msra.mxu0 0.0
    %385 = vmatprep.subr.mxu0 0.0
    %386 = vmatpush2.msra.mxu0 0.0
    %387 = vmatprep.subr.mxu0 0.0
    %388 = vmatpush2.msra.mxu0 0.0
    %389 = vmatprep.subr.mxu0 0.0
    %390 = vmatpush2.msra.mxu0 0.0
    %391 = vmatprep.subr.mxu0 0.0
    %392 = vmatpush2.msra.mxu0 0.0
    %393 = vmatprep.subr.mxu0 0.0
    %394 = vmatpush2.msra.mxu0 0.0
    %395 = vmatprep.subr.mxu0 0.0
    %396 = vmatpush2.msra.mxu0 0.0
    %397 = vmatprep.subr.mxu0 0.0
    %398 = vmatpush2.msra.mxu0 0.0
    %399 = vmatprep.subr.mxu0 0.0
    %400 = vmatpush2.msra.mxu0 0.0
    %401 = vmatprep.mubr.f32.mxu0 0.0
    %402 = vmatmul.mubr.f32.gmra.mxu0 %v332
    %v403 = vpop.f32.mrf.mxu0
    %v404 = vadd.f32 %v329, %v403
    %v405 = vpop.f32.mrf.mxu0
    %406 = vdwg.mxu0
    %407 = vst [vmem:[#allocation5] sm:$0xff] %v404
    // Predicated region
    $region42: #{tpu_custom_call.1} parent=1 // pred_check
      _
    $region43: #{tpu_custom_call.1} parent=1 // pred_check_branch
      %409 = sbr.rel (0) target = $region45
    $region44: #{tpu_custom_call.1} parent=1 // pred_region
      %s411 = ssub.s32 128, 128
      %412 = vsyncadd [#allocation4], %s411
      %s414 = sshll.u32 [#allocation5], 4
      %s415 = int_to_ptr.vmem [resolvable:$true] %s414
      %417 = dma.vmem_to_hbm [thread:$0]  %s415, 128, %s9, [#allocation4]
    $region45: #{tpu_custom_call.1} parent=1 // pred_fallthru
      _
    // Predicated region
    $region46: #{tpu_custom_call.1} parent=1 // pred_check
      _
    $region47: #{tpu_custom_call.1} parent=1 // pred_check_branch
      %419 = sbr.rel (0) target = $region49
    $region48: #{tpu_custom_call.1} parent=1 // pred_region
      %420 = dma.done [#allocation4], 128
    $region49: #{tpu_custom_call.1} parent=1 // pred_fallthru
      _
    %421 = vsyncpa [#allocation3], 1
    %422 = vsyncpa [#allocation4], 1

</llo_original>
